<compile_context>
chip_gen: v7x
topology: tpu7x:2x2x1
jax: 0.10.0
libtpu: 0.0.40
codegen_flags: <defaults>
</compile_context>

<pallas_src>
import functools
import math

import jax
import jax.numpy as jnp
from jax.experimental import pallas as pl
from jax.experimental.pallas import tpu as pltpu

LANE = 128
_SUPPORTED_LOSSES = ('weighted_RMSE', 'weighted_MSE', 'weighted_MAE',
                     'weighted_MAE+MSE', 'weighted_MAE+RMSE')


def _round_up(x: int, m: int) -> int:
    return -(-x // m) * m


@functools.lru_cache(maxsize=1)
def _chip_class() -> str:
    try:
        kind = jax.devices()[0].device_kind.lower()
    except Exception:
        return 'unknown'
    if 'v7' in kind:
        return 'v7x'
    if 'v6' in kind:
        return 'v6e'
    if 'v5 lite' in kind or 'v5e' in kind or 'v5litepod' in kind:
        return 'v5e'
    return 'unknown'


def _default_tile_rows() -> int:
    # 4096x128 f32 = 2 MiB per buffer; double-buffered pred+targ = 16 MiB.
    return {'v7x': 4096, 'v6e': 4096, 'v5e': 2048}.get(_chip_class(), 2048)


def _row_weight_info(pred_shape, w_shape):
    """If `weights` (right-aligned broadcast, leading singletons allowed) is
    constant over a trailing block whose flattened size is a multiple of LANE,
    return (k, n_w, rows_per_w) so it can stream as one value per 128-lane row.
    Otherwise None (-> full elementwise fallback)."""
    nd = len(pred_shape)
    if len(w_shape) > nd:
        return None
    ws = (1,) * (nd - len(w_shape)) + tuple(w_shape)
    k = nd
    while k > 0 and ws[k - 1] == 1:
        k -= 1
    for d in range(k):
        if ws[d] not in (1, pred_shape[d]):
            return None
    trailing = math.prod(pred_shape[k:])
    if trailing == 0 or trailing % LANE != 0:
        return None
    n_w = math.prod(pred_shape[:k])
    return k, n_w, trailing // LANE


def _make_loss_kernel(loss_type, loss_lambda, weight_mode, needs_mask,
                      rows, tile_rows, steps_per_shard):
    def compute(p_ref, t_ref, w_ref, acc_ref):
        # Zero the vreg-sized carried accumulator at the start of each sweep.
        @pl.when(pl.program_id(1) == 0)
        def _():
            acc_ref[...] = jnp.zeros_like(acc_ref)

        diff = p_ref[...].astype(jnp.float32) - t_ref[...].astype(jnp.float32)
        mae = jnp.abs(diff)  # == sqrt(diff*diff) elementwise

        if loss_type in ('weighted_RMSE', 'weighted_MAE'):
            per = mae
        elif loss_type == 'weighted_MSE':
            per = diff * diff
        elif loss_type == 'weighted_MAE+MSE':
            per = mae + loss_lambda * (diff * diff)
        else:  # 'weighted_MAE+RMSE': mae + lambda * sqrt(diff^2)
            per = (1.0 + loss_lambda) * mae

        if w_ref is not None:
            per = per * w_ref[...].astype(jnp.float32)

        if needs_mask:
            # Ragged final tile: zero rows past the true row count (applied
            # after the weight multiply so OOB garbage never survives).
            row0 = (pl.program_id(0) * steps_per_shard
                    + pl.program_id(1)) * tile_rows
            ridx = jax.lax.broadcasted_iota(jnp.int32, (tile_rows, LANE), 0)
            per = jnp.where(ridx + row0 < rows, per, 0.0)

        # Tile-local tree reduce to one vreg, then accumulate (pure VPU adds).
        acc_ref[...] += jnp.sum(per.reshape(-1, 8, LANE), axis=0)[None]

    if weight_mode == 'none':
        def kernel(p_ref, t_ref, acc_ref):
            compute(p_ref, t_ref, None, acc_ref)
    else:
        def kernel(p_ref, t_ref, w_ref, acc_ref):
            compute(p_ref, t_ref, w_ref, acc_ref)
    return kernel


@functools.partial(
    jax.jit,
    static_argnames=('loss_type', 'loss_lambda', 'regular_type',
                     'regular_lambda', 'max_tile_rows'),
)
def custom_weighted_loss(
    prediction,
    target,
    weights=None,
    model_params=None,                 # optional pytree of parameter arrays
    *,
    loss_type: str = 'weighted_RMSE',
    loss_lambda: float = 1.0,
    regular_type: str | None = None,
    regular_lambda: float = 1e-05,
    max_tile_rows: int | None = None,  # None -> chip-aware default
):
    if loss_type not in _SUPPORTED_LOSSES:
        raise ValueError(f'Unsupported loss type: {loss_type}')
    assert prediction.shape == target.shape

    chip = _chip_class()
    total = int(prediction.size)
    itemsize = jnp.dtype(prediction.dtype).itemsize
    sub = max(8, 8 * (4 // max(1, itemsize)))  # 8 (f32) / 16 (bf16) / 32 (int8)

    # ---- flattened [rows, 128] view; copy only when total isn't lane-aligned ----
    pad_elems = (-total) % LANE
    rows = (total + pad_elems) // LANE

    def to2d(x):
        flat = x.reshape(-1)
        if pad_elems:
            flat = jnp.pad(flat, (0, pad_elems))   # <128 zeros; contribute 0 loss
        return flat.reshape(rows, LANE)

    pred2d = to2d(prediction)
    targ2d = to2d(target)

    cfg_rows = max_tile_rows if max_tile_rows is not None else _default_tile_rows()
    tile_rows = min(_round_up(max(cfg_rows, sub), sub), _round_up(rows, sub))
    steps_total = -(-rows // tile_rows)
    num_shards = 2 if (chip == 'v7x' and steps_total >= 2) else 1
    steps_per_shard = -(-steps_total // num_shards)
    covered_rows = num_shards * steps_per_shard * tile_rows
    needs_mask = covered_rows != rows            # ragged final tile(s)

    # ---- weight stream: drop it, shrink it to per-row, or full fallback ----
    if weights is None:
        weight_mode = 'none'
        w_arr = None
    else:
        info = _row_weight_info(prediction.shape, weights.shape)
        if info is not None:
            weight_mode = 'row'
            k, n_w, rows_per_w = info
            nd = len(prediction.shape)
            ws = (1,) * (nd - len(weights.shape)) + tuple(weights.shape)
            w_groups = jnp.broadcast_to(
                weights.reshape(ws),
                tuple(prediction.shape[:k]) + (1,) * (nd - k)).reshape(n_w)
            w_arr = jnp.repeat(w_groups.astype(jnp.float32),
                               rows_per_w).reshape(rows, 1)
        else:
            weight_mode = 'full'
            # Keep original dtype; cast inside the kernel.
            w_full = jnp.broadcast_to(weights, prediction.shape).reshape(-1)
            if pad_elems:
                w_full = jnp.pad(w_full, (0, pad_elems))
            w_arr = w_full.reshape(rows, LANE)

    # ---- specs / grid ----
    last_block = steps_total - 1
    if covered_rows > steps_total * tile_rows:
        # v7x 2-shard split with odd step count: clamp fully-out-of-range block
        # indices onto the last real block; the in-kernel mask zeroes it anyway.
        def row_map(s, i):
            return (jnp.minimum(s * steps_per_shard + i, last_block), 0)
    else:
        def row_map(s, i):
            return (s * steps_per_shard + i, 0)

    in_specs = [pl.BlockSpec((tile_rows, LANE), row_map),
                pl.BlockSpec((tile_rows, LANE), row_map)]
    args = [pred2d, targ2d]
    if weight_mode == 'row':
        # TODO(synk): a (tile_rows,1) block lane-pads in VMEM; an SMEM
        # scalar-prefetch weight table would free ~2-4 MiB of VMEM but needs a
        # vector gather from SMEM that has no clean Pallas equivalent today.
        in_specs.append(pl.BlockSpec((tile_rows, 1), row_map))
        args.append(w_arr)
    elif weight_mode == 'full':
        in_specs.append(pl.BlockSpec((tile_rows, LANE), row_map))
        args.append(w_arr)

    out_spec = pl.BlockSpec((1, 8, LANE), lambda s, i: (s, 0, 0))

    if num_shards == 2:
        dim_sem = (pltpu.CORE_PARALLEL, pltpu.ARBITRARY)   # real 2-TC split (v7x)
    else:
        dim_sem = ("parallel", "arbitrary")
    vmem_limit = 32 * 1024 * 1024 if chip in ('v6e', 'v7x') else None

    bytes_in = sum(int(a.size) * jnp.dtype(a.dtype).itemsize for a in args)
    cost = pl.CostEstimate(flops=4 * total, transcendentals=0,
                           bytes_accessed=bytes_in + num_shards * 8 * LANE * 4)

    kernel = _make_loss_kernel(loss_type, float(loss_lambda), weight_mode,
                               needs_mask, rows, tile_rows, steps_per_shard)

    partials = pl.pallas_call(
        kernel,
        out_shape=jax.ShapeDtypeStruct((num_shards, 8, LANE), jnp.float32),
        grid_spec=pltpu.PrefetchScalarGridSpec(
            num_scalar_prefetch=0,
            grid=(num_shards, steps_per_shard),
            in_specs=in_specs,
            out_specs=out_spec),
        compiler_params=pltpu.CompilerParams(
            dimension_semantics=dim_sem,
            vmem_limit_bytes=vmem_limit),
        cost_estimate=cost,
    )(*args)

    # TODO(synk): for >~1e9-element tensors consider a two-level (per-step
    # partial) f32 reduce to bound sequential-accumulation drift vs jnp.mean.
    loss = jnp.sum(partials) / jnp.float32(total)

    # ----- regularization over model parameters (tiny; plain JAX) -----
    # TODO(synk): `model` (an nn.Module) has no Pallas equivalent; the penalty
    # is reproduced over an arbitrary pytree of parameter arrays in plain JAX.
    if regular_type and model_params is not None:
        leaves = jax.tree_util.tree_leaves(model_params)
        if regular_type == 'L1':
            reg = sum(jnp.sum(jnp.abs(p)) for p in leaves)
        elif regular_type == 'L2':
            reg = sum(jnp.sum(jnp.square(p)) for p in leaves)
        elif regular_type == 'L1+L2':
            reg = sum(jnp.sum(jnp.abs(p)) + jnp.sum(jnp.square(p))
                      for p in leaves)
        else:
            raise ValueError(f'Unsupported regularization type: {regular_type}')
        loss = loss + jnp.float32(regular_lambda) * reg

    return loss


def _ref_loss(prediction, target, weights, loss_type, loss_lambda):
    """Pure-JAX reference mirroring the PyTorch module exactly (incl. sqrt)."""
    diff = prediction.astype(jnp.float32) - target.astype(jnp.float32)
    mse = diff * diff
    mae = jnp.abs(diff)
    if loss_type == 'weighted_RMSE':
        per = jnp.sqrt(mse)
    elif loss_type == 'weighted_MSE':
        per = mse
    elif loss_type == 'weighted_MAE':
        per = mae
    elif loss_type == 'weighted_MAE+MSE':
        per = mae + loss_lambda * mse
    elif loss_type == 'weighted_MAE+RMSE':
        per = mae + loss_lambda * jnp.sqrt(mse)
    if weights is not None:
        per = per * jnp.broadcast_to(weights, per.shape)
    return jnp.mean(per)


def _check(name, out, ref, ok):
    out = jax.block_until_ready(out)
    if not jnp.allclose(out, ref, rtol=2e-5, atol=1e-6):
        print(f"MISMATCH {name}: {out} vs {ref}")
        return False
    return ok


if __name__ == "__main__":
    key = jax.random.PRNGKey(0)
    k1, k2, k3, k4 = jax.random.split(key, 4)

    ok = True

    # NCHW tensors: batch=2, channels=4, spatial=16x16 -> 2048 elements.
    B, C, H, W = 2, 4, 16, 16
    prediction = jax.random.normal(k1, (B, C, H, W), dtype=jnp.float32)
    target = jax.random.normal(k2, (B, C, H, W), dtype=jnp.float32)
    # per-sample weights broadcast over C,H,W -> compact per-row weight stream
    weights = jax.random.uniform(k3, (B, 1, 1, 1), dtype=jnp.float32) + 0.5

    for lt in ('weighted_RMSE', 'weighted_MSE', 'weighted_MAE',
               'weighted_MAE+MSE', 'weighted_MAE+RMSE'):
        out = custom_weighted_loss(prediction, target, weights,
                                   loss_type=lt, loss_lambda=0.5)
        ref = _ref_loss(prediction, target, weights, lt, 0.5)
        ok = _check(f"{lt}/row-weights", out, ref, ok)

    # No weights -> kernel variant with only two input streams.
    out = custom_weighted_loss(prediction, target, None,
                               loss_type='weighted_MAE+MSE', loss_lambda=0.3)
    ref = _ref_loss(prediction, target, None, 'weighted_MAE+MSE', 0.3)
    ok = _check("no-weights", out, ref, ok)

    # Full elementwise weights -> fallback full weight stream (original dtype).
    w_full = jax.random.uniform(k4, (B, C, H, W), dtype=jnp.float32) + 0.1
    out = custom_weighted_loss(prediction, target, w_full,
                               loss_type='weighted_MSE')
    ref = _ref_loss(prediction, target, w_full, 'weighted_MSE', 1.0)
    ok = _check("full-weights", out, ref, ok)

    # Per-channel weights (1,C,1,1): now routed through the compact row path.
    w_ch = jax.random.uniform(k4, (1, C, 1, 1), dtype=jnp.float32) + 0.1
    out = custom_weighted_loss(prediction, target, w_ch,
                               loss_type='weighted_MAE')
    ref = _ref_loss(prediction, target, w_ch, 'weighted_MAE', 1.0)
    ok = _check("channel-weights", out, ref, ok)

    # Odd shape (not a multiple of 8x128) -> tiny lane pad + in-kernel row mask.
    p_odd = jax.random.normal(k1, (2, 3, 7, 5), dtype=jnp.float32)
    t_odd = jax.random.normal(k2, (2, 3, 7, 5), dtype=jnp.float32)
    w_odd = jax.random.uniform(k3, (2, 3, 7, 5), dtype=jnp.float32) + 0.1
    out = custom_weighted_loss(p_odd, t_odd, None, loss_type='weighted_RMSE')
    ref = _ref_loss(p_odd, t_odd, None, 'weighted_RMSE', 1.0)
    ok = _check("odd-shape/no-weights", out, ref, ok)
    out = custom_weighted_loss(p_odd, t_odd, w_odd, loss_type='weighted_MAE+RMSE',
                               loss_lambda=0.7)
    ref = _ref_loss(p_odd, t_odd, w_odd, 'weighted_MAE+RMSE', 0.7)
    ok = _check("odd-shape/full-weights", out, ref, ok)

    # Multi-step grid (exercises the carried vreg accumulator across steps).
    p_big = jax.random.normal(k1, (2, 8, 16, 16), dtype=jnp.float32)
    t_big = jax.random.normal(k2, (2, 8, 16, 16), dtype=jnp.float32)
    w_big = jax.random.uniform(k3, (2, 1, 1, 1), dtype=jnp.float32) + 0.5
    out = custom_weighted_loss(p_big, t_big, w_big, loss_type='weighted_MSE',
                               max_tile_rows=8)
    ref = _ref_loss(p_big, t_big, w_big, 'weighted_MSE', 1.0)
    ok = _check("multi-step", out, ref, ok)

    # Ragged multi-step grid (last tile partially out of bounds -> row mask).
    p_rag = jax.random.normal(k1, (2, 5, 16, 16), dtype=jnp.float32)
    t_rag = jax.random.normal(k2, (2, 5, 16, 16), dtype=jnp.float32)
    w_rag = jax.random.uniform(k4, (2, 5, 16, 16), dtype=jnp.float32) + 0.1
    out = custom_weighted_loss(p_rag, t_rag, None, loss_type='weighted_MAE',
                               max_tile_rows=8)
    ref = _ref_loss(p_rag, t_rag, None, 'weighted_MAE', 1.0)
    ok = _check("ragged-multi-step/no-weights", out, ref, ok)
    out = custom_weighted_loss(p_rag, t_rag, w_rag, loss_type='weighted_MAE+MSE',
                               loss_lambda=0.25, max_tile_rows=8)
    ref = _ref_loss(p_rag, t_rag, w_rag, 'weighted_MAE+MSE', 0.25)
    ok = _check("ragged-multi-step/full-weights", out, ref, ok)

    # Regularization over a parameter pytree.
    params = {"w": jax.random.normal(key, (8, 8)), "b": jnp.ones((8,))}
    out_reg = custom_weighted_loss(prediction, target, weights,
                                   model_params=params,
                                   loss_type='weighted_RMSE',
                                   regular_type='L2', regular_lambda=1e-5)
    ref_reg = (_ref_loss(prediction, target, weights, 'weighted_RMSE', 1.0)
               + 1e-5 * (jnp.sum(jnp.square(params["w"]))
                         + jnp.sum(jnp.square(params["b"]))))
    ok = _check("L2-regularization", out_reg, ref_reg, ok)

    if ok:
        print("KERNEL_OK")
</pallas_src>

<mosaic_0001>
module attributes {stable_mosaic.version = 11 : i64} {
  func.func @kernel(%arg0: i32, %arg1: i32, %arg2: memref<16x128xf32, #tpu.memory_space<vmem>>, %arg3: memref<16x128xf32, #tpu.memory_space<vmem>>, %arg4: memref<16x1xf32, #tpu.memory_space<vmem>>, %arg5: memref<1x8x128xf32, #tpu.memory_space<vmem>>) attributes {dimension_semantics = [#tpu.dimension_semantics<parallel>, #tpu.dimension_semantics<arbitrary>], iteration_bounds = array<i64: 1, 1>, scalar_prefetch = 0 : i64, scratch_operands = 0 : i64, tpu.core_type = #tpu.core_type<tc>, window_params = [{transform_indices = @transform_0, window_bounds = array<i64: 16, 128>}, {transform_indices = @transform_1, window_bounds = array<i64: 16, 128>}, {transform_indices = @transform_2, window_bounds = array<i64: 16, 1>}, {transform_indices = @transform_3, window_bounds = array<i64: 1, 8, 128>}]} {
    %c0_i32 = arith.constant 0 : i32
    %0 = arith.cmpi eq, %arg1, %c0_i32 : i32
    %1 = arith.extui %0 : i1 to i32
    %c0_i32_0 = arith.constant 0 : i32
    %2 = arith.cmpi ne, %1, %c0_i32_0 : i32
    scf.if %2 {
      %cst_12 = arith.constant 0.000000e+00 : f32
      %16 = vector.broadcast %cst_12 : f32 to vector<1x8x128xf32>
      %c0_13 = arith.constant 0 : index
      %c0_14 = arith.constant 0 : index
      %c0_15 = arith.constant 0 : index
      %17 = vector.load %arg5[%c0_13, %c0_14, %c0_15] : memref<1x8x128xf32, #tpu.memory_space<vmem>>, vector<1x8x128xf32>
      tpu.vector_store %arg5[%c0_13, %c0_14, %c0_15], %16 {strides = array<i32>} : memref<1x8x128xf32, #tpu.memory_space<vmem>>, vector<1x8x128xf32>,
    } else {
    }
    %c0 = arith.constant 0 : index
    %c0_1 = arith.constant 0 : index
    %3 = vector.load %arg2[%c0, %c0_1] : memref<16x128xf32, #tpu.memory_space<vmem>>, vector<16x128xf32>
    %c0_2 = arith.constant 0 : index
    %c0_3 = arith.constant 0 : index
    %4 = vector.load %arg3[%c0_2, %c0_3] : memref<16x128xf32, #tpu.memory_space<vmem>>, vector<16x128xf32>
    %5 = arith.subf %3, %4 : vector<16x128xf32>
    %6 = math.absf %5 : vector<16x128xf32>
    %c0_4 = arith.constant 0 : index
    %c0_5 = arith.constant 0 : index
    %7 = vector.load %arg4[%c0_4, %c0_5] : memref<16x1xf32, #tpu.memory_space<vmem>>, vector<16x1xf32>
    %8 = vector.broadcast %7 : vector<16x1xf32> to vector<16x128xf32>
    %9 = arith.mulf %6, %8 : vector<16x128xf32>
    %c0_6 = arith.constant 0 : index
    %c0_7 = arith.constant 0 : index
    %c0_8 = arith.constant 0 : index
    %10 = vector.load %arg5[%c0_6, %c0_7, %c0_8] : memref<1x8x128xf32, #tpu.memory_space<vmem>>, vector<1x8x128xf32>
    %11 = vector.shape_cast %9 : vector<16x128xf32> to vector<2x8x128xf32>
    %cst = arith.constant dense<0.000000e+00> : vector<8x128xf32>
    %12 = vector.multi_reduction <add>, %11, %cst [0] : vector<2x8x128xf32> to vector<8x128xf32>
    %13 = vector.shape_cast %12 : vector<8x128xf32> to vector<1x8x128xf32>
    %14 = arith.addf %10, %13 : vector<1x8x128xf32>
    %c0_9 = arith.constant 0 : index
    %c0_10 = arith.constant 0 : index
    %c0_11 = arith.constant 0 : index
    %15 = vector.load %arg5[%c0_9, %c0_10, %c0_11] : memref<1x8x128xf32, #tpu.memory_space<vmem>>, vector<1x8x128xf32>
    tpu.vector_store %arg5[%c0_9, %c0_10, %c0_11], %14 {strides = array<i32>} : memref<1x8x128xf32, #tpu.memory_space<vmem>>, vector<1x8x128xf32>,
    return
  }
  func.func @transform_0(%arg0: i32, %arg1: i32) -> (i32, i32) {
    %c1_i32 = arith.constant 1 : i32
    %0 = arith.muli %arg0, %c1_i32 : i32
    %1 = arith.addi %0, %arg1 : i32
    %c0_i32 = arith.constant 0 : i32
    %c0_i32_0 = arith.constant 0 : i32
    return %1, %c0_i32 : i32, i32
  }
  func.func @transform_1(%arg0: i32, %arg1: i32) -> (i32, i32) {
    %c1_i32 = arith.constant 1 : i32
    %0 = arith.muli %arg0, %c1_i32 : i32
    %1 = arith.addi %0, %arg1 : i32
    %c0_i32 = arith.constant 0 : i32
    %c0_i32_0 = arith.constant 0 : i32
    return %1, %c0_i32 : i32, i32
  }
  func.func @transform_2(%arg0: i32, %arg1: i32) -> (i32, i32) {
    %c1_i32 = arith.constant 1 : i32
    %0 = arith.muli %arg0, %c1_i32 : i32
    %1 = arith.addi %0, %arg1 : i32
    %c0_i32 = arith.constant 0 : i32
    %c0_i32_0 = arith.constant 0 : i32
    return %1, %c0_i32 : i32, i32
  }
  func.func @transform_3(%arg0: i32, %arg1: i32) -> (i32, i32, i32) {
    %c0_i32 = arith.constant 0 : i32
    %c0_i32_0 = arith.constant 0 : i32
    %c0_i32_1 = arith.constant 0 : i32
    return %arg0, %c0_i32, %c0_i32_0 : i32, i32, i32
  }
}

</mosaic_0001>

<llo_original>
// kernel: custom_weighted_loss.1
$region0: #{custom_weighted_loss.1}
  #allocation0 [shape = 'u32[]', space=smem, size = 0x4, offset = 0x4, fixed_abs, tag = 'smem constant byte address 0x4 - core index']
  #allocation1 [shape = 'u32[144,128]{1,0:T(1,128)}', space=vmem, size = 0x12000, scoped, tag = 'internal scratch']
  %s0 = inlined_call_operand.vmem [shape: f32[16,128], index: 0, kind: input, shape index: {}]
  %s1 = inlined_call_operand.vmem [shape: f32[16,128], index: 1, kind: input, shape index: {}]
  %s2 = inlined_call_operand.vmem [shape: f32[16,1], index: 2, kind: input, shape index: {}]
  %s3 = inlined_call_operand.vmem [shape: f32[1,8,128], index: 3, kind: output, shape index: {}]
  %s4 = sld [smem:[#allocation0]]
  $region26: #{custom_weighted_loss.1} parent=0
    _
  %s6 = ssub.s32 1, %s4
  %s7 = scalar_select 0, %s6, %s4
  // Predicated region
  $region2: #{custom_weighted_loss.1} parent=0 // pred_check
    _
  $region3: #{custom_weighted_loss.1} parent=0 // pred_check_branch
    %9 = sbr.rel (0) target = $region5
  $region4: #{custom_weighted_loss.1} parent=0 // pred_region
    %s10 = sadd.s32 0, 0
    %s11 = smul.u32 2, %s10
    %p12 = scmp.lt.s32.totalorder %s11, 1
    %s13 = scalar_select %p12, %s11, 1
    %s14 = smul.addr %s13, 8
    %s15 = scalar_lea.vmem %s0, %s14
    %s16 = sadd.s32 0, 0
    %s17 = smul.u32 2, %s16
  $region5: #{custom_weighted_loss.1} parent=0 // pred_fallthru
    _
  // Predicated region
  $region6: #{custom_weighted_loss.1} parent=0 // pred_check
    _
  $region7: #{custom_weighted_loss.1} parent=0 // pred_check_branch
    %19 = sbr.rel (0) target = $region9
  $region8: #{custom_weighted_loss.1} parent=0 // pred_region
    %s20 = sadd.s32 0, 0
    %s21 = smul.u32 2, %s20
    %p22 = scmp.lt.s32.totalorder %s21, 1
    %s23 = scalar_select %p22, %s21, 1
    %s24 = smul.addr %s23, 8
    %s25 = scalar_lea.vmem %s1, %s24
    %s26 = sadd.s32 0, 0
    %s27 = smul.u32 2, %s26
  $region9: #{custom_weighted_loss.1} parent=0 // pred_fallthru
    _
  // Predicated region
  $region10: #{custom_weighted_loss.1} parent=0 // pred_check
    _
  $region11: #{custom_weighted_loss.1} parent=0 // pred_check_branch
    %29 = sbr.rel (0) target = $region13
  $region12: #{custom_weighted_loss.1} parent=0 // pred_region
    %s30 = sadd.s32 0, 0
    %s31 = smul.u32 2, %s30
    %p32 = scmp.lt.s32.totalorder %s31, 1
    %s33 = scalar_select %p32, %s31, 1
    %s34 = smul.addr %s33, 8
    %s35 = scalar_lea.vmem %s2, %s34
    %s36 = sadd.s32 0, 0
    %s37 = smul.u32 2, %s36
  $region13: #{custom_weighted_loss.1} parent=0 // pred_fallthru
    _
  %s38 = sadd.s32 0, 0
  %s39 = smul.u32 2, %s38
  %p40 = scmp.lt.s32.totalorder %s39, 1
  %s41 = scalar_select %p40, %s39, 1
  %s42 = smul.addr %s41, 8
  %s43 = scalar_lea.vmem %s0, %s42
  %s44 = sadd.s32 0, 0
  %s45 = smul.u32 2, %s44
  %p46 = scmp.lt.s32.totalorder %s45, 1
  %s47 = scalar_select %p46, %s45, 1
  %s48 = smul.addr %s47, 8
  %s49 = scalar_lea.vmem %s1, %s48
  %s50 = sadd.s32 0, 0
  %s51 = smul.u32 2, %s50
  %p52 = scmp.lt.s32.totalorder %s51, 1
  %s53 = scalar_select %p52, %s51, 1
  %s54 = smul.addr %s53, 8
  %s55 = scalar_lea.vmem %s2, %s54
  %s56 = sadd.s32 0, 0
  %s57 = smul.u32 2, %s56
  %p58 = scmp.lt.s32.totalorder %s57, 1
  %s59 = scalar_select %p58, %s57, 1
  %s60 = smul.addr %s59, 8
  %s61 = scalar_lea.vmem %s0, %s60
  %s62 = sadd.s32 0, 0
  %s63 = smul.u32 2, %s62
  %s64 = sadd.s32 0, 0
  %s65 = smul.u32 2, %s64
  %p66 = scmp.lt.s32.totalorder %s65, 1
  %s67 = scalar_select %p66, %s65, 1
  %s68 = smul.addr %s67, 8
  %s69 = scalar_lea.vmem %s1, %s68
  %s70 = sadd.s32 0, 0
  %s71 = smul.u32 2, %s70
  %s72 = sadd.s32 0, 0
  %s73 = smul.u32 2, %s72
  %p74 = scmp.lt.s32.totalorder %s73, 1
  %s75 = scalar_select %p74, %s73, 1
  %s76 = smul.addr %s75, 8
  %s77 = scalar_lea.vmem %s2, %s76
  %s78 = sadd.s32 0, 0
  %s79 = smul.u32 2, %s78
  %p80 = scmp.eq.s32.totalorder 0, 0
  // Predicated region
  $region14: #{custom_weighted_loss.1} parent=0 // pred_check
    %p81 = pneg %p80
  $region15: #{custom_weighted_loss.1} parent=0 // pred_check_branch
    %83 = sbr.rel (%p81) target = $region17
  $region16: #{custom_weighted_loss.1} parent=0 // pred_region
    %84 = vst [vmem:[%s3] sm:$0xff] 0.0
  $region17: #{custom_weighted_loss.1} parent=0 // pred_fallthru
    _
  %v85 = vld [vmem:[%s61] sm:$0xff]
  %v86 = vld [vmem:[%s61 + $0x8] sm:$0xff]
  %v87 = vld [vmem:[%s69] sm:$0xff]
  %v88 = vld [vmem:[%s69 + $0x8] sm:$0xff]
  %v89 = vsub.f32 %v85, %v87
  %v90 = vsub.f32 %v86, %v88
  %v91 = vand.u32 2147483647, %v89
  %v92 = vand.u32 2147483647, %v90
  %v93 = vld [vmem:[%s77] sm:$0xff]
  %v94 = vld [vmem:[%s77 + $0x8] sm:$0xff]
  %96 = vset.pattern.permute.xlu0 0
  %97 = vperm.xlu0 %96, %v93
  %v98 = vpop.permute.xlu0 %97
  %101 = vset.pattern.permute.xlu0 0
  %102 = vperm.xlu0 %101, %v94
  %v103 = vpop.permute.xlu0 %102
  %v105 = vmul.f32 %v91, %v98
  %v106 = vmul.f32 %v92, %v103
  %v107 = vld [vmem:[%s3] sm:$0xff]
  %v108 = vadd.f32 %v105, %v106
  %v109 = vadd.f32 %v107, %v108
  %110 = vst [vmem:[%s3] sm:$0xff] %v109
  // Predicated region
  $region18: #{custom_weighted_loss.1} parent=0 // pred_check
    _
  $region19: #{custom_weighted_loss.1} parent=0 // pred_check_branch
    %112 = sbr.rel (0) target = $region21
  $region20: #{custom_weighted_loss.1} parent=0 // pred_region
    _
  $region21: #{custom_weighted_loss.1} parent=0 // pred_fallthru
    _
  // Predicated region
  $region22: #{custom_weighted_loss.1} parent=0 // pred_check
    _
  $region23: #{custom_weighted_loss.1} parent=0 // pred_check_branch
    %114 = sbr.rel (0) target = $region25
  $region24: #{custom_weighted_loss.1} parent=0 // pred_region
    _
  $region25: #{custom_weighted_loss.1} parent=0 // pred_fallthru
    _

</llo_original>
